<compile_context>
chip_gen: v5e
topology: v5e:2x2
jax: 0.10.0
libtpu: 0.0.40
codegen_flags: <defaults>
</compile_context>

<pallas_src>
import jax
import jax.numpy as jnp
from jax.experimental import pallas as pl
from jax.experimental.pallas import tpu as pltpu


def _head_kernel(x_ref, extra_ref, wx_ref, we_ref, o_ref, acc_ref):
    # x_ref:     (bB, C, bHW)  current X chunk (flattened spatial on the lane axis)
    # extra_ref: (bB, E)       [X_city, gsd, 1]
    # wx_ref:    (C, 2)        feature weights, pre-scaled by 1/(H*W)
    # we_ref:    (E, 2)        [Wc; Wg; bias]
    # o_ref:     (bB, 2)
    # acc_ref:   (bB, C) f32   running pooled-sum accumulator
    j = pl.program_id(1)

    @pl.when(j == 0)
    def _():
        acc_ref[...] = jnp.zeros_like(acc_ref)

    # Partial spatial sum for this chunk (mean scale is folded into wx on the host).
    acc_ref[...] += jnp.sum(x_ref[...], axis=-1)

    @pl.when(j == pl.num_programs(1) - 1)
    def _():
        out = jnp.dot(acc_ref[...], wx_ref[...], preferred_element_type=jnp.float32)
        out = out + jnp.dot(extra_ref[...], we_ref[...], preferred_element_type=jnp.float32)
        o_ref[...] = out.astype(o_ref.dtype)


def encoder_regression_head_v2(X, X_city, X_gsd, weight, bias, *, hw_block=None, b_block=None):
    """X: (B, C, H, W) f32, X_city: (B, C_city) f32, X_gsd: (B,) f32,
    weight: (2, D) f32 with D = C + C_city + 1, bias: (2,) f32."""
    B, C, H, W = X.shape
    C_city = X_city.shape[1]
    D = C + C_city + 1
    assert weight.shape == (2, D) and bias.shape == (2,)

    HW = H * W
    x_flat = X.reshape(B, C, HW).astype(jnp.float32)

    # Fold the 1/(H*W) mean scale into the feature-weight slice (kernel sums only).
    wT = weight.T.astype(jnp.float32)                   # (D, 2)
    wx = wT[:C] * (1.0 / jnp.float32(HW))               # (C, 2)

    # Collapse city / gsd / bias into one (B, E) @ (E, 2) epilogue operand pair.
    E = C_city + 2
    extra = jnp.concatenate(
        [X_city.astype(jnp.float32),
         X_gsd.reshape(B, 1).astype(jnp.float32),
         jnp.ones((B, 1), jnp.float32)], axis=1)        # (B, E)
    w_extra = jnp.concatenate(
        [wT[C:], bias.reshape(1, 2).astype(jnp.float32)], axis=0)  # (E, 2)

    # ---- block-size selection (sized for v7x's smaller VMEM as well) ----
    if b_block is None:
        b_block = B if B <= 8 else 8
    Bp = pl.cdiv(B, b_block) * b_block

    if hw_block is None:
        target_bytes = 6 * 1024 * 1024                  # per X block; x2 double-buffered
        max_hw = max(128, (target_bytes // (b_block * C * 4)) // 128 * 128)
        if HW <= 128:
            hw_block = HW                               # full extent is always legal
        else:
            hw_block = min(max_hw, pl.cdiv(HW, 128) * 128)
    if HW <= hw_block:
        hw_block = HW
    HWp = pl.cdiv(HW, hw_block) * hw_block

    # Zero-pad the reduction axis / batch axis if needed (zeros don't change the sum).
    if Bp != B or HWp != HW:
        x_flat = jnp.pad(x_flat, ((0, Bp - B), (0, 0), (0, HWp - HW)))
    if Bp != B:
        extra = jnp.pad(extra, ((0, Bp - B), (0, 0)))

    grid = (Bp // b_block, HWp // hw_block)

    cost = pl.CostEstimate(
        flops=B * C * HW + 2 * B * (C + E) * 2,
        transcendentals=0,
        bytes_accessed=4 * (B * C * HW + B * E + (C + E) * 2 + B * 2),
    )

    out = pl.pallas_call(
        _head_kernel,
        out_shape=jax.ShapeDtypeStruct((Bp, 2), jnp.float32),
        grid_spec=pltpu.PrefetchScalarGridSpec(
            num_scalar_prefetch=0,
            grid=grid,
            in_specs=[
                pl.BlockSpec((b_block, C, hw_block), lambda i, j: (i, 0, j)),
                pl.BlockSpec((b_block, E), lambda i, j: (i, 0)),
                pl.BlockSpec((C, 2), lambda i, j: (0, 0)),
                pl.BlockSpec((E, 2), lambda i, j: (0, 0)),
            ],
            out_specs=pl.BlockSpec((b_block, 2), lambda i, j: (i, 0)),
            scratch_shapes=[pltpu.VMEM((b_block, C), jnp.float32)],
        ),
        compiler_params=pltpu.CompilerParams(
            dimension_semantics=("parallel", "arbitrary"),
            vmem_limit_bytes=32 * 1024 * 1024,
        ),
        cost_estimate=cost,
    )(x_flat, extra, wx, w_extra)
    return out[:B]


def _reference(X, X_city, X_gsd, weight, bias):
    pooled = jnp.mean(X, axis=(2, 3))                        # (B, C)
    feat = jnp.concatenate([pooled, X_city, X_gsd[:, None]], axis=1)
    return feat @ weight.T + bias


if __name__ == "__main__":
    key = jax.random.PRNGKey(0)
    B, C, H, W = 2, 4, 16, 16
    C_city = 3
    D = C + C_city + 1

    k1, k2, k3, k4, k5 = jax.random.split(key, 5)
    X = jax.random.normal(k1, (B, C, H, W), dtype=jnp.float32)
    X_city = jax.random.normal(k2, (B, C_city), dtype=jnp.float32)
    X_gsd = jax.random.normal(k3, (B,), dtype=jnp.float32)

    # Deterministic Linear(D, 2) params (nn.Linear-style uniform bounds).
    bound = 1.0 / jnp.sqrt(jnp.float32(D))
    weight = jax.random.uniform(k4, (2, D), jnp.float32, -bound, bound)
    bias = jax.random.uniform(k5, (2,), jnp.float32, -bound, bound)

    ref = _reference(X, X_city, X_gsd, weight, bias)

    # 1) auto block sizes (single reduction step at this small size)
    out_auto = jax.block_until_ready(encoder_regression_head_v2(X, X_city, X_gsd, weight, bias))
    assert out_auto.shape == (B, 2)
    assert jnp.allclose(out_auto, ref, atol=1e-5, rtol=1e-5), (out_auto, ref)

    # 2) forced hw_block=128 -> 2-step reduction grid, exercises pl.when init/epilogue
    out_tiled = jax.block_until_ready(
        encoder_regression_head_v2(X, X_city, X_gsd, weight, bias, hw_block=128))
    assert out_tiled.shape == (B, 2)
    assert jnp.allclose(out_tiled, ref, atol=1e-5, rtol=1e-5), (out_tiled, ref)

    print("KERNEL_OK")
</pallas_src>

<mosaic_0001>
module attributes {stable_mosaic.version = 11 : i64} {
  func.func @_head_kernel(%arg0: i32, %arg1: i32, %arg2: memref<2x4x256xf32, #tpu.memory_space<vmem>>, %arg3: memref<2x5xf32, #tpu.memory_space<vmem>>, %arg4: memref<4x2xf32, #tpu.memory_space<vmem>>, %arg5: memref<5x2xf32, #tpu.memory_space<vmem>>, %arg6: memref<2x2xf32, #tpu.memory_space<vmem>>, %arg7: memref<2x4xf32, #tpu.memory_space<vmem>>) attributes {dimension_semantics = [#tpu.dimension_semantics<parallel>, #tpu.dimension_semantics<arbitrary>], iteration_bounds = array<i64: 1, 1>, scalar_prefetch = 0 : i64, scratch_operands = 1 : i64, tpu.core_type = #tpu.core_type<tc>, window_params = [{transform_indices = @transform_0, window_bounds = array<i64: 2, 4, 256>}, {transform_indices = @transform_1, window_bounds = array<i64: 2, 5>}, {pipeline_mode = #tpu.pipeline_mode<synchronous>, transform_indices = @transform_2, window_bounds = array<i64: 4, 2>}, {pipeline_mode = #tpu.pipeline_mode<synchronous>, transform_indices = @transform_3, window_bounds = array<i64: 5, 2>}, {transform_indices = @transform_4, window_bounds = array<i64: 2, 2>}]} {
    %c0_i32 = arith.constant 0 : i32
    %0 = arith.cmpi eq, %arg1, %c0_i32 : i32
    %1 = arith.extui %0 : i1 to i32
    %c0_i32_0 = arith.constant 0 : i32
    %2 = arith.cmpi ne, %1, %c0_i32_0 : i32
    scf.if %2 {
      %cst_9 = arith.constant 0.000000e+00 : f32
      %11 = vector.broadcast %cst_9 : f32 to vector<2x4xf32>
      %c0_10 = arith.constant 0 : index
      %c0_11 = arith.constant 0 : index
      %12 = vector.load %arg7[%c0_10, %c0_11] : memref<2x4xf32, #tpu.memory_space<vmem>>, vector<2x4xf32>
      tpu.vector_store %arg7[%c0_10, %c0_11], %11 {strides = array<i32>} : memref<2x4xf32, #tpu.memory_space<vmem>>, vector<2x4xf32>,
    } else {
    }
    %c0 = arith.constant 0 : index
    %c0_1 = arith.constant 0 : index
    %3 = vector.load %arg7[%c0, %c0_1] : memref<2x4xf32, #tpu.memory_space<vmem>>, vector<2x4xf32>
    %c0_2 = arith.constant 0 : index
    %c0_3 = arith.constant 0 : index
    %c0_4 = arith.constant 0 : index
    %4 = vector.load %arg2[%c0_2, %c0_3, %c0_4] : memref<2x4x256xf32, #tpu.memory_space<vmem>>, vector<2x4x256xf32>
    %cst = arith.constant dense<0.000000e+00> : vector<2x4xf32>
    %5 = vector.multi_reduction <add>, %4, %cst [2] : vector<2x4x256xf32> to vector<2x4xf32>
    %6 = arith.addf %3, %5 : vector<2x4xf32>
    %c0_5 = arith.constant 0 : index
    %c0_6 = arith.constant 0 : index
    %7 = vector.load %arg7[%c0_5, %c0_6] : memref<2x4xf32, #tpu.memory_space<vmem>>, vector<2x4xf32>
    tpu.vector_store %arg7[%c0_5, %c0_6], %6 {strides = array<i32>} : memref<2x4xf32, #tpu.memory_space<vmem>>, vector<2x4xf32>,
    %c0_i32_7 = arith.constant 0 : i32
    %8 = arith.cmpi eq, %arg1, %c0_i32_7 : i32
    %9 = arith.extui %8 : i1 to i32
    %c0_i32_8 = arith.constant 0 : i32
    %10 = arith.cmpi ne, %9, %c0_i32_8 : i32
    scf.if %10 {
      %c0_9 = arith.constant 0 : index
      %c0_10 = arith.constant 0 : index
      %11 = vector.load %arg7[%c0_9, %c0_10] : memref<2x4xf32, #tpu.memory_space<vmem>>, vector<2x4xf32>
      %c0_11 = arith.constant 0 : index
      %c0_12 = arith.constant 0 : index
      %12 = vector.load %arg4[%c0_11, %c0_12] : memref<4x2xf32, #tpu.memory_space<vmem>>, vector<4x2xf32>
      %cst_13 = arith.constant dense<0.000000e+00> : vector<2x2xf32>
      %13 = tpu.matmul %11, %12, %cst_13 {dimension_numbers = #tpu.dot_dimension_numbers<[1], [0], [0], [1], [0, 0, 1, 1], [], []>} : vector<2x4xf32>, vector<4x2xf32>, vector<2x2xf32> -> vector<2x2xf32>
      %c0_14 = arith.constant 0 : index
      %c0_15 = arith.constant 0 : index
      %14 = vector.load %arg3[%c0_14, %c0_15] : memref<2x5xf32, #tpu.memory_space<vmem>>, vector<2x5xf32>
      %c0_16 = arith.constant 0 : index
      %c0_17 = arith.constant 0 : index
      %15 = vector.load %arg5[%c0_16, %c0_17] : memref<5x2xf32, #tpu.memory_space<vmem>>, vector<5x2xf32>
      %cst_18 = arith.constant dense<0.000000e+00> : vector<2x2xf32>
      %16 = tpu.matmul %14, %15, %cst_18 {dimension_numbers = #tpu.dot_dimension_numbers<[1], [0], [0], [1], [0, 0, 1, 1], [], []>} : vector<2x5xf32>, vector<5x2xf32>, vector<2x2xf32> -> vector<2x2xf32>
      %17 = arith.addf %13, %16 : vector<2x2xf32>
      %c0_19 = arith.constant 0 : index
      %c0_20 = arith.constant 0 : index
      %18 = vector.load %arg6[%c0_19, %c0_20] : memref<2x2xf32, #tpu.memory_space<vmem>>, vector<2x2xf32>
      tpu.vector_store %arg6[%c0_19, %c0_20], %17 {strides = array<i32>} : memref<2x2xf32, #tpu.memory_space<vmem>>, vector<2x2xf32>,
    } else {
    }
    return
  }
  func.func @transform_0(%arg0: i32, %arg1: i32) -> (i32, i32, i32) {
    %c0_i32 = arith.constant 0 : i32
    %c0_i32_0 = arith.constant 0 : i32
    return %arg0, %c0_i32, %arg1 : i32, i32, i32
  }
  func.func @transform_1(%arg0: i32, %arg1: i32) -> (i32, i32) {
    %c0_i32 = arith.constant 0 : i32
    %c0_i32_0 = arith.constant 0 : i32
    return %arg0, %c0_i32 : i32, i32
  }
  func.func @transform_2(%arg0: i32, %arg1: i32) -> (i32, i32) {
    %c0_i32 = arith.constant 0 : i32
    %c0_i32_0 = arith.constant 0 : i32
    %c0_i32_1 = arith.constant 0 : i32
    return %c0_i32, %c0_i32_0 : i32, i32
  }
  func.func @transform_3(%arg0: i32, %arg1: i32) -> (i32, i32) {
    %c0_i32 = arith.constant 0 : i32
    %c0_i32_0 = arith.constant 0 : i32
    %c0_i32_1 = arith.constant 0 : i32
    return %c0_i32, %c0_i32_0 : i32, i32
  }
  func.func @transform_4(%arg0: i32, %arg1: i32) -> (i32, i32) {
    %c0_i32 = arith.constant 0 : i32
    %c0_i32_0 = arith.constant 0 : i32
    return %arg0, %c0_i32 : i32, i32
  }
}

</mosaic_0001>

<llo_original>
// kernel: tpu_custom_call.1
$region0: #{tpu_custom_call.1}
  #allocation0 [shape = 'u32[]', space=smem, size = 0x4, offset = 0x4, fixed_abs, tag = 'smem constant byte address 0x4 - core index']
  #allocation1 [shape = 'u32[72,128]{1,0:T(1,128)}', space=vmem, size = 0x9000, scoped, tag = 'internal scratch']
  #allocation2 [shape = 'f32[2,4]{1,0:T(2,128)}', space=vmem, size = 0x400, scoped, tag = 'scratch operand']
  %s0 = inlined_call_operand.hbm [shape: f32[2,4,256], index: 0, kind: input, shape index: {}]
  %s1 = inlined_call_operand.vmem [shape: f32[2,5], index: 1, kind: input, shape index: {}]
  %s2 = inlined_call_operand.vmem [shape: f32[4,2], index: 2, kind: input, shape index: {}]
  %s3 = inlined_call_operand.vmem [shape: f32[5,2], index: 3, kind: input, shape index: {}]
  %s4 = inlined_call_operand.hbm [shape: f32[2,2], index: 4, kind: output, shape index: {}]
  %s5 = sld [smem:[#allocation0]]
  $region38: #{tpu_custom_call.1} parent=0
    _
  %s7 = ssub.s32 1, %s5
  %s8 = scalar_select 0, %s7, %s5
  $region1: #{tpu_custom_call.1} parent=0
    #allocation3 [shape = 'u8[8192]{0}', space=vmem, size = 0x2000, scoped, tag = 'input window, operand 0, single buffered']
    #allocation4 [shape = 's32[1]{0}', space=sflag, size = 0x4, scoped, tag = 'scoped memory for tpu_custom_call.1']
    #allocation5 [shape = 's32[1]{0}', space=sflag, size = 0x4, scoped, tag = 'scoped memory for tpu_custom_call.1']
    #allocation6 [shape = 'u8[1024]{0}', space=vmem, size = 0x400, scoped, tag = 'output window, operand 0, single buffered']
    %9 = vsyncpa [#allocation4], 0
    %10 = vsyncpa [#allocation5], 0
    // Predicated region
    $region2: #{tpu_custom_call.1} parent=1 // pred_check
      _
    $region3: #{tpu_custom_call.1} parent=1 // pred_check_branch
      %12 = sbr.rel (0) target = $region5
    $region4: #{tpu_custom_call.1} parent=1 // pred_region
      %14 = vsyncadd [#allocation4], 0
      %s15 = sshll.u32 %s0, 4
      %s16 = int_to_ptr.hbm [resolvable:$true] %s15
      %s17 = sshll.u32 [#allocation3], 4
      %s18 = int_to_ptr.vmem [resolvable:$true] %s17
      %23 = dma.hbm_to_vmem [thread:$0]  %s16, 256, %s18, [#allocation4], 128, 128, 8
    $region5: #{tpu_custom_call.1} parent=1 // pred_fallthru
      _
    // Predicated region
    $region6: #{tpu_custom_call.1} parent=1 // pred_check
      _
    $region7: #{tpu_custom_call.1} parent=1 // pred_check_branch
      %25 = sbr.rel (0) target = $region9
    $region8: #{tpu_custom_call.1} parent=1 // pred_region
      _
    $region9: #{tpu_custom_call.1} parent=1 // pred_fallthru
      _
    // Predicated region
    $region10: #{tpu_custom_call.1} parent=1 // pred_check
      _
    $region11: #{tpu_custom_call.1} parent=1 // pred_check_branch
      %27 = sbr.rel (0) target = $region13
    $region12: #{tpu_custom_call.1} parent=1 // pred_region
      _
    $region13: #{tpu_custom_call.1} parent=1 // pred_fallthru
      _
    // Predicated region
    $region14: #{tpu_custom_call.1} parent=1 // pred_check
      _
    $region15: #{tpu_custom_call.1} parent=1 // pred_check_branch
      %29 = sbr.rel (0) target = $region17
    $region16: #{tpu_custom_call.1} parent=1 // pred_region
      _
    $region17: #{tpu_custom_call.1} parent=1 // pred_fallthru
      _
    // Predicated region
    $region18: #{tpu_custom_call.1} parent=1 // pred_check
      _
    $region19: #{tpu_custom_call.1} parent=1 // pred_check_branch
      %31 = sbr.rel (0) target = $region21
    $region20: #{tpu_custom_call.1} parent=1 // pred_region
      %33 = dma.done [#allocation4], 256
    $region21: #{tpu_custom_call.1} parent=1 // pred_fallthru
      _
    %p34 = scmp.eq.s32.totalorder 0, 0
    // Predicated region
    $region22: #{tpu_custom_call.1} parent=1 // pred_check
      %p35 = pneg %p34
    $region23: #{tpu_custom_call.1} parent=1 // pred_check_branch
      %37 = sbr.rel (%p35) target = $region25
    $region24: #{tpu_custom_call.1} parent=1 // pred_region
      %vm38 = vcmask 25600
      %39 = vst.msk [vmem:[#allocation2] sm:$0x3] %vm38, 0.0
    $region25: #{tpu_custom_call.1} parent=1 // pred_fallthru
      _
    %v40 = vld [vmem:[#allocation2] sm:$0x3]
    %v41 = vld [vmem:[#allocation3] sm:$0xff]
    %v42 = vld [vmem:[#allocation3 + $0x8] sm:$0xff]
    %45 = vst [vmem:[#allocation1] ss:$2 sm:$0xff] %v41
    %v46 = vld.sshfl [vmem:[#allocation1] sm:$0xff pattern:$0x75316420]
    %v47 = vld.sshfl [vmem:[#allocation1 + $0x8] sm:$0xff pattern:$0x75316420]
    %s48 = scalar_lea.vmem [#allocation1], 16
    %49 = vst [vmem:[%s48] ss:$2 sm:$0xff] %v42
    %v50 = vld.sshfl [vmem:[#allocation1 + $0x10] sm:$0xff pattern:$0x75316420]
    %v51 = vld.sshfl [vmem:[#allocation1 + $0x18] sm:$0xff pattern:$0x75316420]
    %vm56 = vcmask 1043456
    %v57 = vsel %vm56, %v46, 0.0
    %v58 = vsel %vm56, %v47, 0.0
    %v59 = vadd.f32 %v57, %v58
    %60 = vadd.xlane.f32.xlu0 %v59
    %v61 = vpop.xlane.xlu0 %60
    %v62 = vsel %vm56, %v50, 0.0
    %v63 = vsel %vm56, %v51, 0.0
    %v64 = vadd.f32 %v62, %v63
    %65 = vadd.xlane.f32.xlu0 %v64
    %v66 = vpop.xlane.xlu0 %65
    %v69 = vlaneseq
    %v70 = vand.u32 %v69, 127
    %v71 = vperm.slane %v61, %v70
    %v72 = vperm.slane %v66, %v70
    %vm73 = vcmask 1041409
    %v74 = vsel %vm73, %v72, %v71
    %v76 = vadd.f32 %v40, %v74
    %vm77 = vcmask 25600
    %78 = vst.msk [vmem:[#allocation2] sm:$0x3] %vm77, %v76
    // Predicated region
    $region26: #{tpu_custom_call.1} parent=1 // pred_check
      %p79 = pneg %p34
    $region27: #{tpu_custom_call.1} parent=1 // pred_check_branch
      %81 = sbr.rel (%p79) target = $region29
    $region28: #{tpu_custom_call.1} parent=1 // pred_region
      %v82 = vld [vmem:[#allocation2] sm:$0x3]
      %v83 = vld [vmem:[%s2] sm:$0xf]
      %v84 = vld [vmem:[%s1] sm:$0x3]
      %v85 = vld [vmem:[%s3] sm:$0x1f]
      %vm86 = vcmask 39936
      %v88 = vsel %vm86, %v84, 0
      %vm90 = vcmask 1044480
      %v92 = vsel %vm90, %v85, 0
      %94 = vmatpush.msra.mxu0 0.0
      %95 = vmatpush.msra.mxu0 0.0
      %96 = vmatpush.msra.mxu0 0.0
      %97 = vmatpush.msra.mxu0 0.0
      %98 = vmatpush.msra.mxu0 0.0
      %99 = vmatpush.msra.mxu0 0.0
      %100 = vmatpush.msra.mxu0 0.0
      %101 = vmatpush.msra.mxu0 0.0
      %102 = vmatpush.msra.mxu0 0.0
      %103 = vmatpush.msra.mxu0 0.0
      %104 = vmatpush.msra.mxu0 0.0
      %105 = vmatpush.msra.mxu0 0.0
      %106 = vmatpush.msra.mxu0 0.0
      %107 = vmatpush.msra.mxu0 0.0
      %108 = vmatpush.msra.mxu0 0.0
      %109 = vmatpush.msra.mxu0 %v92
      %110 = vmatmul.f32.gmra.mxu0 %v88
      %v111 = vpop.f32.mrf.mxu0
      %v112 = vadd.f32 0.0, %v111
      %113 = vdwg.mxu0
      %vm114 = vcmask 31744
      %v116 = vsel %vm114, %v82, 0
      %v119 = vsel %vm56, %v83, 0
      %121 = vmatpush.msra.mxu0 0.0
      %122 = vmatpush.msra.mxu0 0.0
      %123 = vmatpush.msra.mxu0 0.0
      %124 = vmatpush.msra.mxu0 0.0
      %125 = vmatpush.msra.mxu0 0.0
      %126 = vmatpush.msra.mxu0 0.0
      %127 = vmatpush.msra.mxu0 0.0
      %128 = vmatpush.msra.mxu0 0.0
      %129 = vmatpush.msra.mxu0 0.0
      %130 = vmatpush.msra.mxu0 0.0
      %131 = vmatpush.msra.mxu0 0.0
      %132 = vmatpush.msra.mxu0 0.0
      %133 = vmatpush.msra.mxu0 0.0
      %134 = vmatpush.msra.mxu0 0.0
      %135 = vmatpush.msra.mxu0 0.0
      %136 = vmatpush.msra.mxu0 %v119
      %137 = vmatmul.f32.gmra.mxu0 %v116
      %v138 = vpop.f32.mrf.mxu0
      %v139 = vadd.f32 %v112, %v138
      %140 = vdwg.mxu0
      %vm141 = vcmask 9216
      %142 = vst.msk [vmem:[#allocation6] sm:$0x3] %vm141, %v139
    $region29: #{tpu_custom_call.1} parent=1 // pred_fallthru
      _
    // Predicated region
    $region30: #{tpu_custom_call.1} parent=1 // pred_check
      _
    $region31: #{tpu_custom_call.1} parent=1 // pred_check_branch
      %144 = sbr.rel (0) target = $region33
    $region32: #{tpu_custom_call.1} parent=1 // pred_region
      %146 = vsyncadd [#allocation5], 0
      %s148 = sshll.u32 [#allocation6], 4
      %s149 = int_to_ptr.vmem [resolvable:$true] %s148
      %s150 = sshll.u32 %s4, 4
      %s151 = int_to_ptr.hbm [resolvable:$true] %s150
      %153 = dma.vmem_to_hbm [thread:$0]  %s149, 32, %s151, [#allocation5]
    $region33: #{tpu_custom_call.1} parent=1 // pred_fallthru
      _
    // Predicated region
    $region34: #{tpu_custom_call.1} parent=1 // pred_check
      _
    $region35: #{tpu_custom_call.1} parent=1 // pred_check_branch
      %155 = sbr.rel (0) target = $region37
    $region36: #{tpu_custom_call.1} parent=1 // pred_region
      %157 = dma.done [#allocation5], 32
    $region37: #{tpu_custom_call.1} parent=1 // pred_fallthru
      _
    %158 = vsyncpa [#allocation4], 1
    %159 = vsyncpa [#allocation5], 1

</llo_original>
